<compile_context>
chip_gen: v5e
topology: v5e:2x2
jax: 0.10.0
libtpu: 0.0.40
codegen_flags: <defaults>
</compile_context>

<pallas_src>
import jax
import jax.numpy as jnp
from jax.experimental import pallas as pl
from jax.experimental.pallas import tpu as pltpu

EPS = 1e-5  # nn.LayerNorm default


def _round_up(n, m):
    return ((n + m - 1) // m) * m


def _prenorm_linear_kernel(x_ref, g_ref, b_ref, w_ref, bias_ref, o_ref):
    """One (tm, tn) output tile: out = (LayerNorm(x)*gamma+beta) @ W[:, tn] + b."""
    x = x_ref[...].astype(jnp.float32)            # (tm, D)
    gamma = g_ref[...].astype(jnp.float32)        # (1, D)
    beta = b_ref[...].astype(jnp.float32)         # (1, D)

    # LayerNorm over the last dim (biased variance, like torch.nn.LayerNorm),
    # statistics in f32 regardless of input dtype.
    mean = jnp.mean(x, axis=-1, keepdims=True)                    # (tm, 1)
    xc = x - mean
    var = jnp.mean(xc * xc, axis=-1, keepdims=True)               # (tm, 1)
    inv = jax.lax.rsqrt(var + EPS)
    xn = xc * inv * gamma + beta                                  # (tm, D) f32

    # Feed the MXU in the weight dtype (bf16 weights -> bf16 LHS/RHS),
    # accumulate in f32.
    xn = xn.astype(w_ref.dtype)
    out = jnp.dot(xn, w_ref[...], preferred_element_type=jnp.float32)  # (tm, tn)
    out = out + bias_ref[...].astype(jnp.float32)
    o_ref[...] = out.astype(o_ref.dtype)


def prenorm_linear(x, gamma, beta, w, bias, *, tm=256, tn=512):
    """x: (B, S, D) -> (B, S, H). PreNorm(dim, Linear(dim, H)) forward."""
    B, S, D = x.shape
    H = w.shape[1]
    R = B * S
    out_dtype = x.dtype

    # ---- row (token) tiling: pad R up to a tile multiple ----
    tm_eff = min(tm, _round_up(R, 8))            # multiple of 8, <= tm
    Rp = _round_up(R, tm_eff)

    # ---- output-feature tiling over H ----
    if H <= tn:
        tn_eff, Hp = H, H                        # single full-width tile
    else:
        tn_eff = tn                              # multiple of 128 -> lane-dense stores
        Hp = _round_up(H, tn_eff)

    x2 = x.reshape(R, D)
    if Rp != R:
        x2 = jnp.pad(x2, ((0, Rp - R), (0, 0)))  # pad rows; sliced off below
    w2 = w
    bias2 = bias.reshape(1, H)
    if Hp != H:
        w2 = jnp.pad(w2, ((0, 0), (0, Hp - H)))
        bias2 = jnp.pad(bias2, ((0, 0), (0, Hp - H)))
    gamma2 = gamma.reshape(1, D)
    beta2 = beta.reshape(1, D)

    grid = (Rp // tm_eff, Hp // tn_eff)

    # ---- explicit VMEM budget (double-buffered tiles), clipped to v7x's 64 MiB ----
    xb = jnp.dtype(x.dtype).itemsize
    wb = jnp.dtype(w.dtype).itemsize
    ob = jnp.dtype(out_dtype).itemsize
    need = 2 * (tm_eff * D * xb            # x tile
                + D * tn_eff * wb          # W slab
                + tn_eff * wb              # bias tile
                + 2 * D * 4                # gamma / beta
                + tm_eff * tn_eff * ob)    # output tile
    vmem_limit = int(min(max(need + (8 << 20), 32 << 20), 64 << 20))

    out2 = pl.pallas_call(
        _prenorm_linear_kernel,
        out_shape=jax.ShapeDtypeStruct((Rp, Hp), out_dtype),
        grid_spec=pltpu.PrefetchScalarGridSpec(
            num_scalar_prefetch=0,
            grid=grid,
            in_specs=[
                pl.BlockSpec((tm_eff, D), lambda i, j: (i, 0)),   # x row tile
                pl.BlockSpec((1, D), lambda i, j: (0, 0)),        # gamma
                pl.BlockSpec((1, D), lambda i, j: (0, 0)),        # beta
                pl.BlockSpec((D, tn_eff), lambda i, j: (0, j)),   # W column slab
                pl.BlockSpec((1, tn_eff), lambda i, j: (0, j)),   # bias slab
            ],
            out_specs=pl.BlockSpec((tm_eff, tn_eff), lambda i, j: (i, j)),
        ),
        compiler_params=pltpu.CompilerParams(
            dimension_semantics=("parallel", "parallel"),
            vmem_limit_bytes=vmem_limit,
        ),
    )(x2, gamma2, beta2, w2, bias2)

    out2 = out2[:R, :H]
    return out2.reshape(B, S, H)


def prenorm_linear_ref(x, gamma, beta, w, bias):
    """Pure-JAX reference matching torch: fn(LayerNorm(x))."""
    x32 = x.astype(jnp.float32)
    mean = jnp.mean(x32, axis=-1, keepdims=True)
    var = jnp.mean((x32 - mean) ** 2, axis=-1, keepdims=True)
    xn = (x32 - mean) * jax.lax.rsqrt(var + EPS) * gamma.astype(jnp.float32) \
        + beta.astype(jnp.float32)
    out = xn @ w.astype(jnp.float32) + bias.astype(jnp.float32)
    return out.astype(x.dtype)


if __name__ == "__main__":
    key = jax.random.PRNGKey(0)

    # ---- small f32 check (single tile) ----
    B, S, D, H = 2, 8, 32, 32
    k_x, k_g, k_b, k_w, k_bias = jax.random.split(key, 5)
    x = jax.random.normal(k_x, (B, S, D), dtype=jnp.float32)
    gamma = 1.0 + 0.1 * jax.random.normal(k_g, (D,), dtype=jnp.float32)
    beta = 0.1 * jax.random.normal(k_b, (D,), dtype=jnp.float32)
    w = jax.random.normal(k_w, (D, H), dtype=jnp.float32) / jnp.sqrt(D)
    bias = 0.1 * jax.random.normal(k_bias, (H,), dtype=jnp.float32)

    out = jax.block_until_ready(prenorm_linear(x, gamma, beta, w, bias))
    ref = prenorm_linear_ref(x, gamma, beta, w, bias)
    assert out.shape == (B, S, H)
    assert jnp.allclose(out, ref, atol=1e-4, rtol=1e-4), "f32 mismatch vs reference"

    # ---- ragged f32 check exercising row/column tiling + padding ----
    B2, S2, D2, H2 = 2, 100, 64, 192          # R=200 (pads to 256), H pads to 256
    k_x2, k_g2, k_b2, k_w2, k_bias2 = jax.random.split(jax.random.PRNGKey(1), 5)
    x2 = jax.random.normal(k_x2, (B2, S2, D2), dtype=jnp.float32)
    gamma2 = 1.0 + 0.1 * jax.random.normal(k_g2, (D2,), dtype=jnp.float32)
    beta2 = 0.1 * jax.random.normal(k_b2, (D2,), dtype=jnp.float32)
    w2 = jax.random.normal(k_w2, (D2, H2), dtype=jnp.float32) / jnp.sqrt(D2)
    bias2 = 0.1 * jax.random.normal(k_bias2, (H2,), dtype=jnp.float32)

    out2 = jax.block_until_ready(
        prenorm_linear(x2, gamma2, beta2, w2, bias2, tm=64, tn=128))
    ref2 = prenorm_linear_ref(x2, gamma2, beta2, w2, bias2)
    assert out2.shape == (B2, S2, H2)
    assert jnp.allclose(out2, ref2, atol=1e-3, rtol=1e-3), "tiled f32 mismatch"

    # ---- bf16 path (bf16 operands feed the MXU, f32 accumulation) ----
    xb = x2.astype(jnp.bfloat16)
    wbf = w2.astype(jnp.bfloat16)
    gbf = gamma2.astype(jnp.bfloat16)
    bbf = beta2.astype(jnp.bfloat16)
    biasbf = bias2.astype(jnp.bfloat16)
    out3 = jax.block_until_ready(
        prenorm_linear(xb, gbf, bbf, wbf, biasbf, tm=64, tn=128))
    ref3 = prenorm_linear_ref(xb, gbf, bbf, wbf, biasbf)
    assert out3.shape == (B2, S2, H2)
    assert jnp.allclose(out3.astype(jnp.float32), ref3.astype(jnp.float32),
                        atol=0.1, rtol=0.1), "bf16 mismatch vs reference"

    print("KERNEL_OK")
</pallas_src>

<mosaic_0001>
module attributes {stable_mosaic.version = 11 : i64} {
  func.func @_prenorm_linear_kernel(%arg0: i32, %arg1: i32, %arg2: memref<16x32xf32, #tpu.memory_space<vmem>>, %arg3: memref<1x32xf32, #tpu.memory_space<vmem>>, %arg4: memref<1x32xf32, #tpu.memory_space<vmem>>, %arg5: memref<32x32xf32, #tpu.memory_space<vmem>>, %arg6: memref<1x32xf32, #tpu.memory_space<vmem>>, %arg7: memref<16x32xf32, #tpu.memory_space<vmem>>) attributes {dimension_semantics = [#tpu.dimension_semantics<parallel>, #tpu.dimension_semantics<parallel>], iteration_bounds = array<i64: 1, 1>, scalar_prefetch = 0 : i64, scratch_operands = 0 : i64, tpu.core_type = #tpu.core_type<tc>, window_params = [{transform_indices = @transform_0, window_bounds = array<i64: 16, 32>}, {pipeline_mode = #tpu.pipeline_mode<synchronous>, transform_indices = @transform_1, window_bounds = array<i64: 1, 32>}, {pipeline_mode = #tpu.pipeline_mode<synchronous>, transform_indices = @transform_2, window_bounds = array<i64: 1, 32>}, {transform_indices = @transform_3, window_bounds = array<i64: 32, 32>}, {transform_indices = @transform_4, window_bounds = array<i64: 1, 32>}, {transform_indices = @transform_5, window_bounds = array<i64: 16, 32>}]} {
    %c0 = arith.constant 0 : index
    %c0_0 = arith.constant 0 : index
    %0 = vector.load %arg2[%c0, %c0_0] : memref<16x32xf32, #tpu.memory_space<vmem>>, vector<16x32xf32>
    %c0_1 = arith.constant 0 : index
    %c0_2 = arith.constant 0 : index
    %1 = vector.load %arg3[%c0_1, %c0_2] : memref<1x32xf32, #tpu.memory_space<vmem>>, vector<1x32xf32>
    %c0_3 = arith.constant 0 : index
    %c0_4 = arith.constant 0 : index
    %2 = vector.load %arg4[%c0_3, %c0_4] : memref<1x32xf32, #tpu.memory_space<vmem>>, vector<1x32xf32>
    %cst = arith.constant dense<0.000000e+00> : vector<16xf32>
    %3 = vector.multi_reduction <add>, %0, %cst [1] : vector<16x32xf32> to vector<16xf32>
    %4 = vector.shape_cast %3 : vector<16xf32> to vector<16x1xf32>
    %cst_5 = arith.constant 3.200000e+01 : f32
    %5 = vector.broadcast %cst_5 : f32 to vector<16x1xf32>
    %6 = arith.divf %4, %5 : vector<16x1xf32>
    %7 = vector.broadcast %6 : vector<16x1xf32> to vector<16x32xf32>
    %8 = arith.subf %0, %7 : vector<16x32xf32>
    %9 = arith.mulf %8, %8 : vector<16x32xf32>
    %cst_6 = arith.constant dense<0.000000e+00> : vector<16xf32>
    %10 = vector.multi_reduction <add>, %9, %cst_6 [1] : vector<16x32xf32> to vector<16xf32>
    %11 = vector.shape_cast %10 : vector<16xf32> to vector<16x1xf32>
    %cst_7 = arith.constant 3.200000e+01 : f32
    %12 = vector.broadcast %cst_7 : f32 to vector<16x1xf32>
    %13 = arith.divf %11, %12 : vector<16x1xf32>
    %cst_8 = arith.constant 9.99999974E-6 : f32
    %14 = vector.broadcast %cst_8 : f32 to vector<16x1xf32>
    %15 = arith.addf %13, %14 : vector<16x1xf32>
    %16 = math.rsqrt %15 : vector<16x1xf32>
    %17 = vector.broadcast %16 : vector<16x1xf32> to vector<16x32xf32>
    %18 = arith.mulf %8, %17 : vector<16x32xf32>
    %19 = vector.broadcast %1 : vector<1x32xf32> to vector<16x32xf32>
    %20 = arith.mulf %18, %19 : vector<16x32xf32>
    %21 = vector.broadcast %2 : vector<1x32xf32> to vector<16x32xf32>
    %22 = arith.addf %20, %21 : vector<16x32xf32>
    %c0_9 = arith.constant 0 : index
    %c0_10 = arith.constant 0 : index
    %23 = vector.load %arg5[%c0_9, %c0_10] : memref<32x32xf32, #tpu.memory_space<vmem>>, vector<32x32xf32>
    %cst_11 = arith.constant dense<0.000000e+00> : vector<16x32xf32>
    %24 = tpu.matmul %22, %23, %cst_11 {dimension_numbers = #tpu.dot_dimension_numbers<[1], [0], [0], [1], [0, 0, 1, 1], [], []>} : vector<16x32xf32>, vector<32x32xf32>, vector<16x32xf32> -> vector<16x32xf32>
    %c0_12 = arith.constant 0 : index
    %c0_13 = arith.constant 0 : index
    %25 = vector.load %arg6[%c0_12, %c0_13] : memref<1x32xf32, #tpu.memory_space<vmem>>, vector<1x32xf32>
    %26 = vector.broadcast %25 : vector<1x32xf32> to vector<16x32xf32>
    %27 = arith.addf %24, %26 : vector<16x32xf32>
    %c0_14 = arith.constant 0 : index
    %c0_15 = arith.constant 0 : index
    %28 = vector.load %arg7[%c0_14, %c0_15] : memref<16x32xf32, #tpu.memory_space<vmem>>, vector<16x32xf32>
    tpu.vector_store %arg7[%c0_14, %c0_15], %27 {strides = array<i32>} : memref<16x32xf32, #tpu.memory_space<vmem>>, vector<16x32xf32>,
    return
  }
  func.func @transform_0(%arg0: i32, %arg1: i32) -> (i32, i32) {
    %c0_i32 = arith.constant 0 : i32
    %c0_i32_0 = arith.constant 0 : i32
    return %arg0, %c0_i32 : i32, i32
  }
  func.func @transform_1(%arg0: i32, %arg1: i32) -> (i32, i32) {
    %c0_i32 = arith.constant 0 : i32
    %c0_i32_0 = arith.constant 0 : i32
    %c0_i32_1 = arith.constant 0 : i32
    return %c0_i32, %c0_i32_0 : i32, i32
  }
  func.func @transform_2(%arg0: i32, %arg1: i32) -> (i32, i32) {
    %c0_i32 = arith.constant 0 : i32
    %c0_i32_0 = arith.constant 0 : i32
    %c0_i32_1 = arith.constant 0 : i32
    return %c0_i32, %c0_i32_0 : i32, i32
  }
  func.func @transform_3(%arg0: i32, %arg1: i32) -> (i32, i32) {
    %c0_i32 = arith.constant 0 : i32
    %c0_i32_0 = arith.constant 0 : i32
    return %c0_i32, %arg1 : i32, i32
  }
  func.func @transform_4(%arg0: i32, %arg1: i32) -> (i32, i32) {
    %c0_i32 = arith.constant 0 : i32
    %c0_i32_0 = arith.constant 0 : i32
    return %c0_i32, %arg1 : i32, i32
  }
  func.func @transform_5(%arg0: i32, %arg1: i32) -> (i32, i32) {
    %c0_i32 = arith.constant 0 : i32
    return %arg0, %arg1 : i32, i32
  }
}

</mosaic_0001>

<llo_original>
// kernel: tpu_custom_call.1
$region0: #{tpu_custom_call.1}
  #allocation0 [shape = 'u32[]', space=smem, size = 0x4, offset = 0x4, fixed_abs, tag = 'smem constant byte address 0x4 - core index']
  #allocation1 [shape = 'u32[72,128]{1,0:T(1,128)}', space=vmem, size = 0x9000, scoped, tag = 'internal scratch']
  %s0 = inlined_call_operand.hbm [shape: f32[16,32], index: 0, kind: input, shape index: {}]
  %s1 = inlined_call_operand.hbm [shape: f32[1,32], index: 1, kind: input, shape index: {}]
  %s2 = inlined_call_operand.vmem [shape: f32[1,32], index: 2, kind: input, shape index: {}]
  %s3 = inlined_call_operand.hbm [shape: f32[32,32], index: 3, kind: input, shape index: {}]
  %s4 = inlined_call_operand.vmem [shape: f32[1,32], index: 4, kind: input, shape index: {}]
  %s5 = inlined_call_operand.hbm [shape: f32[16,32], index: 5, kind: output, shape index: {}]
  %s6 = sld [smem:[#allocation0]]
  $region42: #{tpu_custom_call.1} parent=0
    _
  %s8 = ssub.s32 1, %s6
  %s9 = scalar_select 0, %s8, %s6
  $region1: #{tpu_custom_call.1} parent=0
    #allocation2 [shape = 'u8[8192]{0}', space=vmem, size = 0x2000, scoped, tag = 'input window, operand 0, single buffered']
    #allocation3 [shape = 's32[1]{0}', space=sflag, size = 0x4, scoped, tag = 'scoped memory for tpu_custom_call.1']
    #allocation4 [shape = 's32[1]{0}', space=sflag, size = 0x4, scoped, tag = 'scoped memory for tpu_custom_call.1']
    #allocation5 [shape = 'u8[512]{0}', space=vmem, size = 0x400, scoped, tag = 'input window, operand 1, single buffered']
    #allocation6 [shape = 's32[1]{0}', space=sflag, size = 0x4, scoped, tag = 'scoped memory for tpu_custom_call.1']
    #allocation7 [shape = 'u8[16384]{0}', space=vmem, size = 0x4000, scoped, tag = 'input window, operand 3, single buffered']
    #allocation8 [shape = 'u8[8192]{0}', space=vmem, size = 0x2000, scoped, tag = 'output window, operand 0, single buffered']
    %10 = vsyncpa [#allocation3], 0
    %11 = vsyncpa [#allocation6], 0
    %12 = vsyncpa [#allocation4], 0
    // Predicated region
    $region2: #{tpu_custom_call.1} parent=1 // pred_check
      _
    $region3: #{tpu_custom_call.1} parent=1 // pred_check_branch
      %14 = sbr.rel (0) target = $region5
    $region4: #{tpu_custom_call.1} parent=1 // pred_region
      %16 = vsyncadd [#allocation3], 0
      %s17 = sshll.u32 %s0, 4
      %s18 = int_to_ptr.hbm [resolvable:$true] %s17
      %s19 = sshll.u32 [#allocation2], 4
      %s20 = int_to_ptr.vmem [resolvable:$true] %s19
      %25 = dma.hbm_to_vmem [thread:$0]  %s18, 256, %s20, [#allocation3], 128, 128, 8
    $region5: #{tpu_custom_call.1} parent=1 // pred_fallthru
      _
    // Predicated region
    $region6: #{tpu_custom_call.1} parent=1 // pred_check
      _
    $region7: #{tpu_custom_call.1} parent=1 // pred_check_branch
      %27 = sbr.rel (0) target = $region9
    $region8: #{tpu_custom_call.1} parent=1 // pred_region
      %29 = vsyncadd [#allocation6], 0
      %s31 = sshll.u32 %s1, 4
      %s32 = int_to_ptr.hbm [resolvable:$true] %s31
      %s33 = sshll.u32 [#allocation5], 4
      %s34 = int_to_ptr.vmem [resolvable:$true] %s33
      %36 = dma.hbm_to_vmem [thread:$0]  %s32, 16, %s34, [#allocation6]
    $region9: #{tpu_custom_call.1} parent=1 // pred_fallthru
      _
    // Predicated region
    $region10: #{tpu_custom_call.1} parent=1 // pred_check
      _
    $region11: #{tpu_custom_call.1} parent=1 // pred_check_branch
      %38 = sbr.rel (0) target = $region13
    $region12: #{tpu_custom_call.1} parent=1 // pred_region
      _
    $region13: #{tpu_custom_call.1} parent=1 // pred_fallthru
      _
    // Predicated region
    $region14: #{tpu_custom_call.1} parent=1 // pred_check
      _
    $region15: #{tpu_custom_call.1} parent=1 // pred_check_branch
      %40 = sbr.rel (0) target = $region17
    $region16: #{tpu_custom_call.1} parent=1 // pred_region
      %42 = vsyncadd [#allocation6], 0
      %s43 = sshll.u32 %s3, 4
      %s44 = int_to_ptr.hbm [resolvable:$true] %s43
      %s45 = sshll.u32 [#allocation7], 4
      %s46 = int_to_ptr.vmem [resolvable:$true] %s45
      %51 = dma.hbm_to_vmem [thread:$0]  %s44, 512, %s46, [#allocation6], 128, 128, 8
    $region17: #{tpu_custom_call.1} parent=1 // pred_fallthru
      _
    // Predicated region
    $region18: #{tpu_custom_call.1} parent=1 // pred_check
      _
    $region19: #{tpu_custom_call.1} parent=1 // pred_check_branch
      %53 = sbr.rel (0) target = $region21
    $region20: #{tpu_custom_call.1} parent=1 // pred_region
      _
    $region21: #{tpu_custom_call.1} parent=1 // pred_fallthru
      _
    // Predicated region
    $region22: #{tpu_custom_call.1} parent=1 // pred_check
      _
    $region23: #{tpu_custom_call.1} parent=1 // pred_check_branch
      %55 = sbr.rel (0) target = $region25
    $region24: #{tpu_custom_call.1} parent=1 // pred_region
      %57 = dma.done [#allocation3], 256
    $region25: #{tpu_custom_call.1} parent=1 // pred_fallthru
      _
    // Predicated region
    $region26: #{tpu_custom_call.1} parent=1 // pred_check
      _
    $region27: #{tpu_custom_call.1} parent=1 // pred_check_branch
      %59 = sbr.rel (0) target = $region29
    $region28: #{tpu_custom_call.1} parent=1 // pred_region
      %61 = dma.done [#allocation6], 16
    $region29: #{tpu_custom_call.1} parent=1 // pred_fallthru
      _
    // Predicated region
    $region30: #{tpu_custom_call.1} parent=1 // pred_check
      _
    $region31: #{tpu_custom_call.1} parent=1 // pred_check_branch
      %63 = sbr.rel (0) target = $region33
    $region32: #{tpu_custom_call.1} parent=1 // pred_region
      %65 = dma.done [#allocation6], 512
    $region33: #{tpu_custom_call.1} parent=1 // pred_fallthru
      _
    %v66 = vld [vmem:[#allocation2] sm:$0xff]
    %v67 = vld [vmem:[#allocation2 + $0x8] sm:$0xff]
    %v68 = vld [vmem:[#allocation5] sm:$0x1]
    %v69 = vld [vmem:[%s2] sm:$0x1]
    %vm70 = vcmask 261120
    %v71 = vsel %vm70, %v66, 0.0
    %72 = vadd.xlane.f32.xlu0 %v71
    %v73 = vpop.xlane.xlu0 %72
    %v74 = vsel %vm70, %v67, 0.0
    %75 = vadd.xlane.f32.xlu0 %v74
    %v76 = vpop.xlane.xlu0 %75
    %v77 = vrcp.pop 32.0
    %v78 = vmul.f32 32.0, %v77
    %v79 = vsub.f32 1.0, %v78
    %v80 = vmul.f32 %v77, %v79
    %v81 = vadd.f32 %v77, %v80
    %vm82 = vweird.f32 %v77
    %v83 = vsel %vm82, %v77, %v81
    %v84 = vmul.f32 %v73, %v83
    %v85 = vmul.f32 %v76, %v83
    %v86 = vsub.f32 %v66, %v84
    %v87 = vsub.f32 %v67, %v85
    %v88 = vmul.f32 %v86, %v86
    %v89 = vmul.f32 %v87, %v87
    %v90 = vsel %vm70, %v88, 0.0
    %91 = vadd.xlane.f32.xlu0 %v90
    %v92 = vpop.xlane.xlu0 %91
    %v93 = vsel %vm70, %v89, 0.0
    %94 = vadd.xlane.f32.xlu0 %v93
    %v95 = vpop.xlane.xlu0 %94
    %v96 = vmul.f32 %v92, %v83
    %v97 = vmul.f32 %v95, %v83
    %v98 = vadd.f32 %v96, 1e-05
    %v99 = vadd.f32 %v97, 1e-05
    %v100 = vrsqrt.pop %v98
    %v101 = vmul.f32 %v100, %v98
    %v102 = vmul.f32 %v101, %v100
    %v103 = vmul.f32 0.5, %v102
    %v104 = vsub.f32 1.5, %v103
    %v105 = vmul.f32 %v100, %v104
    %vm106 = vweird.f32 %v98
    %vm107 = vweird.f32 %v100
    %vm108 = vmor %vm106, %vm107
    %v109 = vsel %vm108, %v100, %v105
    %v110 = vrsqrt.pop %v99
    %v111 = vmul.f32 %v110, %v99
    %v112 = vmul.f32 %v111, %v110
    %v113 = vmul.f32 0.5, %v112
    %v114 = vsub.f32 1.5, %v113
    %v115 = vmul.f32 %v110, %v114
    %vm116 = vweird.f32 %v99
    %vm117 = vweird.f32 %v110
    %vm118 = vmor %vm116, %vm117
    %v119 = vsel %vm118, %v110, %v115
    %v120 = vmul.f32 %v86, %v109
    %v121 = vmul.f32 %v87, %v119
    %v123 = vperm.slane %v68, 0
    %v125 = vmul.f32 %v120, %v123
    %v126 = vmul.f32 %v121, %v123
    %v128 = vperm.slane %v69, 0
    %v130 = vadd.f32 %v125, %v128
    %v131 = vadd.f32 %v126, %v128
    %v132 = vld [vmem:[#allocation7] sm:$0xff]
    %v133 = vld [vmem:[#allocation7 + $0x8] sm:$0xff]
    %v134 = vld [vmem:[#allocation7 + $0x10] sm:$0xff]
    %v135 = vld [vmem:[#allocation7 + $0x18] sm:$0xff]
    %v136 = vld [vmem:[%s4] sm:$0x1]
    %v138 = vperm.slane %v136, 0
    %v141 = vsel %vm70, %v130, 0
    %v144 = vsel %vm70, %v131, 0
    %146 = vmatpush.msra.mxu0 0.0
    %147 = vmatpush.msra.mxu0 0.0
    %148 = vmatpush.msra.mxu0 0.0
    %149 = vmatpush.msra.mxu0 0.0
    %150 = vmatpush.msra.mxu0 0.0
    %151 = vmatpush.msra.mxu0 0.0
    %152 = vmatpush.msra.mxu0 0.0
    %153 = vmatpush.msra.mxu0 0.0
    %154 = vmatpush.msra.mxu0 0.0
    %155 = vmatpush.msra.mxu0 0.0
    %156 = vmatpush.msra.mxu0 0.0
    %157 = vmatpush.msra.mxu0 0.0
    %158 = vmatpush.msra.mxu0 %v135
    %159 = vmatpush.msra.mxu0 %v134
    %160 = vmatpush.msra.mxu0 %v133
    %161 = vmatpush.msra.mxu0 %v132
    %162 = vmatmul.f32.gmra.mxu0 %v141
    %v163 = vpop.f32.mrf.mxu0
    %v164 = vadd.f32 %v138, %v163
    %165 = vmatmul.f32.gmra.mxu0 %v144
    %v166 = vpop.f32.mrf.mxu0
    %v167 = vadd.f32 %v138, %v166
    %168 = vdwg.mxu0
    %169 = vst.msk [vmem:[#allocation8] sm:$0xff] %vm70, %v164
    %170 = vst.msk [vmem:[#allocation8 + $0x8] sm:$0xff] %vm70, %v167
    // Predicated region
    $region34: #{tpu_custom_call.1} parent=1 // pred_check
      _
    $region35: #{tpu_custom_call.1} parent=1 // pred_check_branch
      %172 = sbr.rel (0) target = $region37
    $region36: #{tpu_custom_call.1} parent=1 // pred_region
      %174 = vsyncadd [#allocation4], 0
      %s175 = sshll.u32 [#allocation8], 4
      %s176 = int_to_ptr.vmem [resolvable:$true] %s175
      %s177 = sshll.u32 %s5, 4
      %s178 = int_to_ptr.hbm [resolvable:$true] %s177
      %183 = dma.vmem_to_hbm [thread:$0]  %s176, 256, %s178, [#allocation4], 128, 128, 8
    $region37: #{tpu_custom_call.1} parent=1 // pred_fallthru
      _
    // Predicated region
    $region38: #{tpu_custom_call.1} parent=1 // pred_check
      _
    $region39: #{tpu_custom_call.1} parent=1 // pred_check_branch
      %185 = sbr.rel (0) target = $region41
    $region40: #{tpu_custom_call.1} parent=1 // pred_region
      %187 = dma.done [#allocation4], 256
    $region41: #{tpu_custom_call.1} parent=1 // pred_fallthru
      _
    %188 = vsyncpa [#allocation3], 1
    %189 = vsyncpa [#allocation6], 1
    %190 = vsyncpa [#allocation4], 1

</llo_original>
